<compile_context>
chip_gen: v5e
topology: v5e:2x2
jax: 0.10.0
libtpu: 0.0.40
codegen_flags: <defaults>
</compile_context>

<pallas_src>
import functools

import jax
import jax.numpy as jnp
from jax.experimental import pallas as pl
from jax.experimental.pallas import tpu as pltpu

HIDDEN = 64        # hidden width of the MLP (fits a single MXU pass)
OUT_PAD = 128      # lane-dense padded output width
DEFAULT_TB = 256   # batch tile (rows per grid step)


def _round_up(x, m):
    return ((x + m - 1) // m) * m


def qnetwork_kernel(x_ref, w1_ref, b1_ref, w2_ref, b2_ref, w3_ref, b3_ref, o_ref):
    # Layer 1: Linear + ReLU  (bf16 operands, f32 accumulation on the MXU)
    h1 = jnp.dot(x_ref[...], w1_ref[...], preferred_element_type=jnp.float32)
    h1 = jnp.maximum(h1 + b1_ref[...], 0.0)
    # Layer 2: Linear + ReLU
    h2 = jnp.dot(h1.astype(w2_ref.dtype), w2_ref[...],
                 preferred_element_type=jnp.float32)
    h2 = jnp.maximum(h2 + b2_ref[...], 0.0)
    # Layer 3: Linear (Q-values, no activation); output tile is lane-dense [TB, 128]
    out = jnp.dot(h2.astype(w3_ref.dtype), w3_ref[...],
                  preferred_element_type=jnp.float32) + b3_ref[...]
    o_ref[...] = out.astype(o_ref.dtype)


def prepare_params(params, state_size):
    """Pad / cast parameters once (hoisted out of the per-call path).

    Weights stored [in, out] (transposed vs. nn.Linear) and cast to bf16;
    biases stay f32. The K (state) dim is padded to a full 8-sublane group,
    output features padded to a lane-dense 128. Only arrays are returned so
    the dict can be passed straight through jit without leaking Python ints
    into traced shape computations.
    """
    w1, b1 = params["w1"], params["b1"]
    w2, b2 = params["w2"], params["b2"]
    w3, b3 = params["w3"], params["b3"]
    action_size = w3.shape[1]
    s_pad = max(8, _round_up(state_size, 8))

    w1p = jnp.zeros((s_pad, HIDDEN), jnp.bfloat16).at[:state_size, :].set(
        w1.astype(jnp.bfloat16))
    w2p = w2.astype(jnp.bfloat16)
    w3p = jnp.zeros((HIDDEN, OUT_PAD), jnp.bfloat16).at[:, :action_size].set(
        w3.astype(jnp.bfloat16))
    b3p = jnp.zeros((1, OUT_PAD), jnp.float32).at[:, :action_size].set(
        b3.astype(jnp.float32))
    return {
        "w1": w1p, "b1": b1.astype(jnp.float32),
        "w2": w2p, "b2": b2.astype(jnp.float32),
        "w3": w3p, "b3": b3p,
    }


@functools.partial(jax.jit, static_argnames=("action_size", "batch_tile"))
def _qnetwork_forward_impl(x, prepared, *, action_size, batch_tile):
    w1, b1 = prepared["w1"], prepared["b1"]
    w2, b2 = prepared["w2"], prepared["b2"]
    w3, b3 = prepared["w3"], prepared["b3"]

    # All sizes below come from STATIC array shapes -> concrete under jit.
    B, state_size = x.shape
    s_pad = w1.shape[0]

    # Batch tile: multiple of 8 sublanes, capped so VMEM stays tiny even on v7x.
    tb = min(batch_tile, _round_up(B, 8))
    b_pad = _round_up(B, tb)

    xp = jnp.zeros((b_pad, s_pad), jnp.bfloat16).at[:B, :state_size].set(
        x.astype(jnp.bfloat16))

    grid = (b_pad // tb,)
    cost = pl.CostEstimate(
        flops=2 * b_pad * (s_pad * HIDDEN + HIDDEN * HIDDEN + HIDDEN * OUT_PAD),
        transcendentals=0,
        bytes_accessed=(b_pad * s_pad * 2                      # x (bf16)
                        + (s_pad + HIDDEN) * HIDDEN * 2        # w1, w2 (bf16)
                        + HIDDEN * OUT_PAD * 2                 # w3 (bf16)
                        + (2 * HIDDEN + OUT_PAD) * 4           # biases (f32)
                        + b_pad * OUT_PAD * 4))                # out (f32)

    out = pl.pallas_call(
        qnetwork_kernel,
        out_shape=jax.ShapeDtypeStruct((b_pad, OUT_PAD), jnp.float32),
        grid_spec=pltpu.PrefetchScalarGridSpec(
            num_scalar_prefetch=0,
            grid=grid,
            in_specs=[
                pl.BlockSpec((tb, s_pad), lambda i: (i, 0)),        # x: streamed per tile
                pl.BlockSpec((s_pad, HIDDEN), lambda i: (0, 0)),    # w1: resident
                pl.BlockSpec((1, HIDDEN), lambda i: (0, 0)),        # b1: resident
                pl.BlockSpec((HIDDEN, HIDDEN), lambda i: (0, 0)),   # w2: resident
                pl.BlockSpec((1, HIDDEN), lambda i: (0, 0)),        # b2: resident
                pl.BlockSpec((HIDDEN, OUT_PAD), lambda i: (0, 0)),  # w3 (padded): resident
                pl.BlockSpec((1, OUT_PAD), lambda i: (0, 0)),       # b3 (padded): resident
            ],
            out_specs=pl.BlockSpec((tb, OUT_PAD), lambda i: (i, 0)),
        ),
        compiler_params=pltpu.CompilerParams(
            dimension_semantics=("parallel",)),
        cost_estimate=cost,
    )(xp, w1, b1, w2, b2, w3, b3)

    return out[:B, :action_size]


def qnetwork_forward(x, prepared, *, action_size, batch_tile=DEFAULT_TB):
    """x: [B, state_size] float32. prepared: output of prepare_params."""
    return _qnetwork_forward_impl(x, prepared, action_size=action_size,
                                  batch_tile=batch_tile)


def init_params(key, state_size, action_size):
    """Deterministic init mimicking PyTorch nn.Linear default (U[-1/sqrt(fan_in), +])."""
    ks = jax.random.split(key, 6)

    def linear(kw, kb, fan_in, fan_out):
        bound = 1.0 / jnp.sqrt(jnp.float32(fan_in))
        w = jax.random.uniform(kw, (fan_in, fan_out), jnp.float32, -bound, bound)
        b = jax.random.uniform(kb, (1, fan_out), jnp.float32, -bound, bound)
        return w, b

    w1, b1 = linear(ks[0], ks[1], state_size, HIDDEN)
    w2, b2 = linear(ks[2], ks[3], HIDDEN, HIDDEN)
    w3, b3 = linear(ks[4], ks[5], HIDDEN, action_size)
    return {"w1": w1, "b1": b1, "w2": w2, "b2": b2, "w3": w3, "b3": b3}


def qnetwork_reference(x, p):
    """Pure-JAX reference mirroring the kernel's bf16-operand / f32-accum math."""
    bf16 = jnp.bfloat16
    h1 = jnp.dot(x.astype(bf16), p["w1"].astype(bf16),
                 preferred_element_type=jnp.float32) + p["b1"]
    h1 = jnp.maximum(h1, 0.0)
    h2 = jnp.dot(h1.astype(bf16), p["w2"].astype(bf16),
                 preferred_element_type=jnp.float32) + p["b2"]
    h2 = jnp.maximum(h2, 0.0)
    return jnp.dot(h2.astype(bf16), p["w3"].astype(bf16),
                   preferred_element_type=jnp.float32) + p["b3"]


if __name__ == "__main__":
    # CartPole-like sizes: state_size=4, action_size=2, small batch.
    state_size, action_size, batch = 4, 2, 8

    key = jax.random.PRNGKey(0)
    k_x, k_p = jax.random.split(key)
    x = jax.random.normal(k_x, (batch, state_size), jnp.float32)
    params = init_params(k_p, state_size, action_size)
    prepared = prepare_params(params, state_size)

    out = qnetwork_forward(x, prepared, action_size=action_size)
    out = jax.block_until_ready(out)

    ref = qnetwork_reference(x, params)
    assert out.shape == (batch, action_size), out.shape
    assert jnp.allclose(out, ref, atol=2e-3, rtol=2e-3), "mismatch vs JAX reference"

    # Also exercise a larger, non-tile-aligned batch (multi-step grid, padding path).
    big_b = 1000
    xb = jax.random.normal(jax.random.PRNGKey(1), (big_b, state_size), jnp.float32)
    out_b = jax.block_until_ready(
        qnetwork_forward(xb, prepared, action_size=action_size))
    ref_b = qnetwork_reference(xb, params)
    assert out_b.shape == (big_b, action_size)
    assert jnp.allclose(out_b, ref_b, atol=2e-3, rtol=2e-3), "mismatch (large batch)"

    print("KERNEL_OK")
</pallas_src>

<mosaic_0001>
module attributes {stable_mosaic.version = 11 : i64} {
  func.func @qnetwork_kernel(%arg0: i32, %arg1: memref<8x8xbf16, #tpu.memory_space<vmem>>, %arg2: memref<8x64xbf16, #tpu.memory_space<vmem>>, %arg3: memref<1x64xf32, #tpu.memory_space<vmem>>, %arg4: memref<64x64xbf16, #tpu.memory_space<vmem>>, %arg5: memref<1x64xf32, #tpu.memory_space<vmem>>, %arg6: memref<64x128xbf16, #tpu.memory_space<vmem>>, %arg7: memref<1x128xf32, #tpu.memory_space<vmem>>, %arg8: memref<8x128xf32, #tpu.memory_space<vmem>>) attributes {dimension_semantics = [#tpu.dimension_semantics<parallel>], iteration_bounds = array<i64: 1>, scalar_prefetch = 0 : i64, scratch_operands = 0 : i64, tpu.core_type = #tpu.core_type<tc>, window_params = [{transform_indices = @transform_0, window_bounds = array<i64: 8, 8>}, {pipeline_mode = #tpu.pipeline_mode<synchronous>, transform_indices = @transform_1, window_bounds = array<i64: 8, 64>}, {pipeline_mode = #tpu.pipeline_mode<synchronous>, transform_indices = @transform_2, window_bounds = array<i64: 1, 64>}, {pipeline_mode = #tpu.pipeline_mode<synchronous>, transform_indices = @transform_3, window_bounds = array<i64: 64, 64>}, {pipeline_mode = #tpu.pipeline_mode<synchronous>, transform_indices = @transform_4, window_bounds = array<i64: 1, 64>}, {pipeline_mode = #tpu.pipeline_mode<synchronous>, transform_indices = @transform_5, window_bounds = array<i64: 64, 128>}, {pipeline_mode = #tpu.pipeline_mode<synchronous>, transform_indices = @transform_6, window_bounds = array<i64: 1, 128>}, {transform_indices = @transform_7, window_bounds = array<i64: 8, 128>}]} {
    %c0 = arith.constant 0 : index
    %c0_0 = arith.constant 0 : index
    %0 = vector.load %arg1[%c0, %c0_0] : memref<8x8xbf16, #tpu.memory_space<vmem>>, vector<8x8xbf16>
    %c0_1 = arith.constant 0 : index
    %c0_2 = arith.constant 0 : index
    %1 = vector.load %arg2[%c0_1, %c0_2] : memref<8x64xbf16, #tpu.memory_space<vmem>>, vector<8x64xbf16>
    %cst = arith.constant dense<0.000000e+00> : vector<8x64xf32>
    %2 = tpu.matmul %0, %1, %cst {dimension_numbers = #tpu.dot_dimension_numbers<[1], [0], [0], [1], [0, 0, 1, 1], [], []>} : vector<8x8xbf16>, vector<8x64xbf16>, vector<8x64xf32> -> vector<8x64xf32>
    %c0_3 = arith.constant 0 : index
    %c0_4 = arith.constant 0 : index
    %3 = vector.load %arg3[%c0_3, %c0_4] : memref<1x64xf32, #tpu.memory_space<vmem>>, vector<1x64xf32>
    %4 = vector.broadcast %3 : vector<1x64xf32> to vector<8x64xf32>
    %5 = arith.addf %2, %4 : vector<8x64xf32>
    %cst_5 = arith.constant 0.000000e+00 : f32
    %6 = vector.broadcast %cst_5 : f32 to vector<8x64xf32>
    %7 = arith.maximumf %5, %6 : vector<8x64xf32>
    %8 = arith.truncf %7 : vector<8x64xf32> to vector<8x64xbf16>
    %c0_6 = arith.constant 0 : index
    %c0_7 = arith.constant 0 : index
    %9 = vector.load %arg4[%c0_6, %c0_7] : memref<64x64xbf16, #tpu.memory_space<vmem>>, vector<64x64xbf16>
    %cst_8 = arith.constant dense<0.000000e+00> : vector<8x64xf32>
    %10 = tpu.matmul %8, %9, %cst_8 {dimension_numbers = #tpu.dot_dimension_numbers<[1], [0], [0], [1], [0, 0, 1, 1], [], []>} : vector<8x64xbf16>, vector<64x64xbf16>, vector<8x64xf32> -> vector<8x64xf32>
    %c0_9 = arith.constant 0 : index
    %c0_10 = arith.constant 0 : index
    %11 = vector.load %arg5[%c0_9, %c0_10] : memref<1x64xf32, #tpu.memory_space<vmem>>, vector<1x64xf32>
    %12 = vector.broadcast %11 : vector<1x64xf32> to vector<8x64xf32>
    %13 = arith.addf %10, %12 : vector<8x64xf32>
    %cst_11 = arith.constant 0.000000e+00 : f32
    %14 = vector.broadcast %cst_11 : f32 to vector<8x64xf32>
    %15 = arith.maximumf %13, %14 : vector<8x64xf32>
    %16 = arith.truncf %15 : vector<8x64xf32> to vector<8x64xbf16>
    %c0_12 = arith.constant 0 : index
    %c0_13 = arith.constant 0 : index
    %17 = vector.load %arg6[%c0_12, %c0_13] : memref<64x128xbf16, #tpu.memory_space<vmem>>, vector<64x128xbf16>
    %cst_14 = arith.constant dense<0.000000e+00> : vector<8x128xf32>
    %18 = tpu.matmul %16, %17, %cst_14 {dimension_numbers = #tpu.dot_dimension_numbers<[1], [0], [0], [1], [0, 0, 1, 1], [], []>} : vector<8x64xbf16>, vector<64x128xbf16>, vector<8x128xf32> -> vector<8x128xf32>
    %c0_15 = arith.constant 0 : index
    %c0_16 = arith.constant 0 : index
    %19 = vector.load %arg7[%c0_15, %c0_16] : memref<1x128xf32, #tpu.memory_space<vmem>>, vector<1x128xf32>
    %20 = vector.broadcast %19 : vector<1x128xf32> to vector<8x128xf32>
    %21 = arith.addf %18, %20 : vector<8x128xf32>
    %c0_17 = arith.constant 0 : index
    %c0_18 = arith.constant 0 : index
    %22 = vector.load %arg8[%c0_17, %c0_18] : memref<8x128xf32, #tpu.memory_space<vmem>>, vector<8x128xf32>
    tpu.vector_store %arg8[%c0_17, %c0_18], %21 {strides = array<i32>} : memref<8x128xf32, #tpu.memory_space<vmem>>, vector<8x128xf32>,
    return
  }
  func.func @transform_0(%arg0: i32) -> (i32, i32) {
    %c0_i32 = arith.constant 0 : i32
    %c0_i32_0 = arith.constant 0 : i32
    return %arg0, %c0_i32 : i32, i32
  }
  func.func @transform_1(%arg0: i32) -> (i32, i32) {
    %c0_i32 = arith.constant 0 : i32
    %c0_i32_0 = arith.constant 0 : i32
    %c0_i32_1 = arith.constant 0 : i32
    return %c0_i32, %c0_i32_0 : i32, i32
  }
  func.func @transform_2(%arg0: i32) -> (i32, i32) {
    %c0_i32 = arith.constant 0 : i32
    %c0_i32_0 = arith.constant 0 : i32
    %c0_i32_1 = arith.constant 0 : i32
    return %c0_i32, %c0_i32_0 : i32, i32
  }
  func.func @transform_3(%arg0: i32) -> (i32, i32) {
    %c0_i32 = arith.constant 0 : i32
    %c0_i32_0 = arith.constant 0 : i32
    %c0_i32_1 = arith.constant 0 : i32
    return %c0_i32, %c0_i32_0 : i32, i32
  }
  func.func @transform_4(%arg0: i32) -> (i32, i32) {
    %c0_i32 = arith.constant 0 : i32
    %c0_i32_0 = arith.constant 0 : i32
    %c0_i32_1 = arith.constant 0 : i32
    return %c0_i32, %c0_i32_0 : i32, i32
  }
  func.func @transform_5(%arg0: i32) -> (i32, i32) {
    %c0_i32 = arith.constant 0 : i32
    %c0_i32_0 = arith.constant 0 : i32
    %c0_i32_1 = arith.constant 0 : i32
    return %c0_i32, %c0_i32_0 : i32, i32
  }
  func.func @transform_6(%arg0: i32) -> (i32, i32) {
    %c0_i32 = arith.constant 0 : i32
    %c0_i32_0 = arith.constant 0 : i32
    %c0_i32_1 = arith.constant 0 : i32
    return %c0_i32, %c0_i32_0 : i32, i32
  }
  func.func @transform_7(%arg0: i32) -> (i32, i32) {
    %c0_i32 = arith.constant 0 : i32
    %c0_i32_0 = arith.constant 0 : i32
    return %arg0, %c0_i32 : i32, i32
  }
}

</mosaic_0001>

<llo_original>
// kernel: _qnetwork_forward_impl.1
$region0: #{_qnetwork_forward_impl.1}
  #allocation0 [shape = 'u32[]', space=smem, size = 0x4, offset = 0x4, fixed_abs, tag = 'smem constant byte address 0x4 - core index']
  #allocation1 [shape = 'u32[72,128]{1,0:T(1,128)}', space=vmem, size = 0x9000, scoped, tag = 'internal scratch']
  %s0 = inlined_call_operand.vmem [shape: bf16[8,8], index: 0, kind: input, shape index: {}]
  %s1 = inlined_call_operand.hbm [shape: bf16[8,64], index: 1, kind: input, shape index: {}]
  %s2 = inlined_call_operand.hbm [shape: f32[1,64], index: 2, kind: input, shape index: {}]
  %s3 = inlined_call_operand.hbm [shape: bf16[64,64], index: 3, kind: input, shape index: {}]
  %s4 = inlined_call_operand.hbm [shape: f32[1,64], index: 4, kind: input, shape index: {}]
  %s5 = inlined_call_operand.vmem [shape: bf16[64,128], index: 5, kind: input, shape index: {}]
  %s6 = inlined_call_operand.hbm [shape: f32[1,128], index: 6, kind: input, shape index: {}]
  %s7 = inlined_call_operand.vmem [shape: f32[8,128], index: 7, kind: output, shape index: {}]
  %s8 = sld [smem:[#allocation0]]
  $region58: #{_qnetwork_forward_impl.1} parent=0
    _
  %s10 = ssub.s32 1, %s8
  %s11 = scalar_select 0, %s10, %s8
  $region1: #{_qnetwork_forward_impl.1} parent=0
    #allocation2 [shape = 'u8[2048]{0}', space=vmem, size = 0x800, scoped, tag = 'input window, operand 1, single buffered']
    #allocation3 [shape = 's32[1]{0}', space=sflag, size = 0x4, scoped, tag = 'scoped memory for _qnetwork_forward_impl.1']
    #allocation4 [shape = 'u8[512]{0}', space=vmem, size = 0x400, scoped, tag = 'input window, operand 2, single buffered']
    #allocation5 [shape = 's32[1]{0}', space=sflag, size = 0x4, scoped, tag = 'scoped memory for _qnetwork_forward_impl.1']
    #allocation6 [shape = 'u8[16384]{0}', space=vmem, size = 0x4000, scoped, tag = 'input window, operand 3, single buffered']
    #allocation7 [shape = 'u8[512]{0}', space=vmem, size = 0x400, scoped, tag = 'input window, operand 4, single buffered']
    #allocation8 [shape = 's32[1]{0}', space=sflag, size = 0x4, scoped, tag = 'scoped memory for _qnetwork_forward_impl.1']
    #allocation9 [shape = 'u8[512]{0}', space=vmem, size = 0x400, scoped, tag = 'input window, operand 6, single buffered']
    %12 = vsyncpa [#allocation3], 0
    %13 = vsyncpa [#allocation5], 0
    %14 = vsyncpa [#allocation8], 0
    // Predicated region
    $region2: #{_qnetwork_forward_impl.1} parent=1 // pred_check
      _
    $region3: #{_qnetwork_forward_impl.1} parent=1 // pred_check_branch
      %16 = sbr.rel (0) target = $region5
    $region4: #{_qnetwork_forward_impl.1} parent=1 // pred_region
      _
    $region5: #{_qnetwork_forward_impl.1} parent=1 // pred_fallthru
      _
    // Predicated region
    $region6: #{_qnetwork_forward_impl.1} parent=1 // pred_check
      _
    $region7: #{_qnetwork_forward_impl.1} parent=1 // pred_check_branch
      %18 = sbr.rel (0) target = $region9
    $region8: #{_qnetwork_forward_impl.1} parent=1 // pred_region
      %20 = vsyncadd [#allocation3], 0
      %s22 = sshll.u32 %s1, 4
      %s23 = int_to_ptr.hbm [resolvable:$true] %s22
      %s24 = sshll.u32 [#allocation2], 4
      %s25 = int_to_ptr.vmem [resolvable:$true] %s24
      %27 = dma.hbm_to_vmem [thread:$0]  %s23, 64, %s25, [#allocation3]
    $region9: #{_qnetwork_forward_impl.1} parent=1 // pred_fallthru
      _
    // Predicated region
    $region10: #{_qnetwork_forward_impl.1} parent=1 // pred_check
      _
    $region11: #{_qnetwork_forward_impl.1} parent=1 // pred_check_branch
      %29 = sbr.rel (0) target = $region13
    $region12: #{_qnetwork_forward_impl.1} parent=1 // pred_region
      %31 = vsyncadd [#allocation5], 0
      %s33 = sshll.u32 %s2, 4
      %s34 = int_to_ptr.hbm [resolvable:$true] %s33
      %s35 = sshll.u32 [#allocation4], 4
      %s36 = int_to_ptr.vmem [resolvable:$true] %s35
      %38 = dma.hbm_to_vmem [thread:$0]  %s34, 16, %s36, [#allocation5]
    $region13: #{_qnetwork_forward_impl.1} parent=1 // pred_fallthru
      _
    // Predicated region
    $region14: #{_qnetwork_forward_impl.1} parent=1 // pred_check
      _
    $region15: #{_qnetwork_forward_impl.1} parent=1 // pred_check_branch
      %40 = sbr.rel (0) target = $region17
    $region16: #{_qnetwork_forward_impl.1} parent=1 // pred_region
      %42 = vsyncadd [#allocation5], 0
      %s43 = sshll.u32 %s3, 4
      %s44 = int_to_ptr.hbm [resolvable:$true] %s43
      %s45 = sshll.u32 [#allocation6], 4
      %s46 = int_to_ptr.vmem [resolvable:$true] %s45
      %51 = dma.hbm_to_vmem [thread:$0]  %s44, 512, %s46, [#allocation5], 64, 64, 4
    $region17: #{_qnetwork_forward_impl.1} parent=1 // pred_fallthru
      _
    // Predicated region
    $region18: #{_qnetwork_forward_impl.1} parent=1 // pred_check
      _
    $region19: #{_qnetwork_forward_impl.1} parent=1 // pred_check_branch
      %53 = sbr.rel (0) target = $region21
    $region20: #{_qnetwork_forward_impl.1} parent=1 // pred_region
      %55 = vsyncadd [#allocation8], 0
      %s57 = sshll.u32 %s4, 4
      %s58 = int_to_ptr.hbm [resolvable:$true] %s57
      %s59 = sshll.u32 [#allocation7], 4
      %s60 = int_to_ptr.vmem [resolvable:$true] %s59
      %62 = dma.hbm_to_vmem [thread:$0]  %s58, 16, %s60, [#allocation8]
    $region21: #{_qnetwork_forward_impl.1} parent=1 // pred_fallthru
      _
    // Predicated region
    $region22: #{_qnetwork_forward_impl.1} parent=1 // pred_check
      _
    $region23: #{_qnetwork_forward_impl.1} parent=1 // pred_check_branch
      %64 = sbr.rel (0) target = $region25
    $region24: #{_qnetwork_forward_impl.1} parent=1 // pred_region
      _
    $region25: #{_qnetwork_forward_impl.1} parent=1 // pred_fallthru
      _
    // Predicated region
    $region26: #{_qnetwork_forward_impl.1} parent=1 // pred_check
      _
    $region27: #{_qnetwork_forward_impl.1} parent=1 // pred_check_branch
      %66 = sbr.rel (0) target = $region29
    $region28: #{_qnetwork_forward_impl.1} parent=1 // pred_region
      %68 = vsyncadd [#allocation8], 0
      %s70 = sshll.u32 %s6, 4
      %s71 = int_to_ptr.hbm [resolvable:$true] %s70
      %s72 = sshll.u32 [#allocation9], 4
      %s73 = int_to_ptr.vmem [resolvable:$true] %s72
      %75 = dma.hbm_to_vmem [thread:$0]  %s71, 16, %s73, [#allocation8]
    $region29: #{_qnetwork_forward_impl.1} parent=1 // pred_fallthru
      _
    // Predicated region
    $region30: #{_qnetwork_forward_impl.1} parent=1 // pred_check
      _
    $region31: #{_qnetwork_forward_impl.1} parent=1 // pred_check_branch
      %77 = sbr.rel (0) target = $region33
    $region32: #{_qnetwork_forward_impl.1} parent=1 // pred_region
      %79 = dma.done [#allocation3], 64
    $region33: #{_qnetwork_forward_impl.1} parent=1 // pred_fallthru
      _
    // Predicated region
    $region34: #{_qnetwork_forward_impl.1} parent=1 // pred_check
      _
    $region35: #{_qnetwork_forward_impl.1} parent=1 // pred_check_branch
      %81 = sbr.rel (0) target = $region37
    $region36: #{_qnetwork_forward_impl.1} parent=1 // pred_region
      %83 = dma.done [#allocation5], 16
    $region37: #{_qnetwork_forward_impl.1} parent=1 // pred_fallthru
      _
    // Predicated region
    $region38: #{_qnetwork_forward_impl.1} parent=1 // pred_check
      _
    $region39: #{_qnetwork_forward_impl.1} parent=1 // pred_check_branch
      %85 = sbr.rel (0) target = $region41
    $region40: #{_qnetwork_forward_impl.1} parent=1 // pred_region
      %87 = dma.done [#allocation5], 512
    $region41: #{_qnetwork_forward_impl.1} parent=1 // pred_fallthru
      _
    // Predicated region
    $region42: #{_qnetwork_forward_impl.1} parent=1 // pred_check
      _
    $region43: #{_qnetwork_forward_impl.1} parent=1 // pred_check_branch
      %89 = sbr.rel (0) target = $region45
    $region44: #{_qnetwork_forward_impl.1} parent=1 // pred_region
      %91 = dma.done [#allocation8], 16
    $region45: #{_qnetwork_forward_impl.1} parent=1 // pred_fallthru
      _
    // Predicated region
    $region46: #{_qnetwork_forward_impl.1} parent=1 // pred_check
      _
    $region47: #{_qnetwork_forward_impl.1} parent=1 // pred_check_branch
      %93 = sbr.rel (0) target = $region49
    $region48: #{_qnetwork_forward_impl.1} parent=1 // pred_region
      %95 = dma.done [#allocation8], 16
    $region49: #{_qnetwork_forward_impl.1} parent=1 // pred_fallthru
      _
    %v97 = vld [vmem:[%s0] sm:$0xf]
    %v98 = vld [vmem:[#allocation2] sm:$0xf]
    %v99 = vld [vmem:[#allocation4] sm:$0x1]
    %v101 = vperm.slane %v99, 0
    %vm103 = vcmask 64512
    %v105 = vsel %vm103, %v97, 0
    %vm107 = vcmask 1043456
    %v109 = vsel %vm107, %v98, 0
    %111 = vmatpush.bf16.msra.mxu0 0
    %112 = vmatpush.bf16.msra.mxu0 0
    %113 = vmatpush.bf16.msra.mxu0 0
    %114 = vmatpush.bf16.msra.mxu0 0
    %115 = vmatpush.bf16.msra.mxu0 0
    %116 = vmatpush.bf16.msra.mxu0 0
    %117 = vmatpush.bf16.msra.mxu0 0
    %118 = vmatpush.bf16.msra.mxu0 %v109
    %119 = vmatmul.bf16.gmra.mxu0 %v105
    %v120 = vpop.f32.mrf.mxu0
    %v121 = vadd.f32 %v101, %v120
    %v122 = vpop.f32.mrf.mxu0
    %123 = vdwg.mxu0
    %v124 = vmax.f32 %v121, 0.0
    %v125 = vpack.c.bf16 %v124, %v124
    %v126 = vld [vmem:[#allocation6] sm:$0xf]
    %v127 = vld [vmem:[#allocation6 + $0x4] sm:$0xf]
    %v128 = vld [vmem:[#allocation6 + $0x8] sm:$0xf]
    %v129 = vld [vmem:[#allocation6 + $0xc] sm:$0xf]
    %v130 = vld [vmem:[#allocation6 + $0x10] sm:$0xf]
    %v131 = vld [vmem:[#allocation6 + $0x14] sm:$0xf]
    %v132 = vld [vmem:[#allocation6 + $0x18] sm:$0xf]
    %v133 = vld [vmem:[#allocation6 + $0x1c] sm:$0xf]
    %v134 = vld [vmem:[#allocation7] sm:$0x1]
    %v136 = vperm.slane %v134, 0
    %v146 = vunpack.c.l.b16 %v126
    %v147 = vunpack.c.l.b16 %v127
    %v148 = vunpack.c.l.b16 %v128
    %v149 = vunpack.c.l.b16 %v129
    %v150 = vunpack.c.l.b16 %v130
    %v151 = vunpack.c.l.b16 %v131
    %v152 = vunpack.c.l.b16 %v132
    %v153 = vunpack.c.l.b16 %v133
    %v154 = vpack.c.b16 %v147, %v146
    %v155 = vpack.c.b16 %v149, %v148
    %v156 = vpack.c.b16 %v151, %v150
    %v157 = vpack.c.b16 %v153, %v152
    %vm162 = vcmask 523264
    %v164 = vsel %vm162, %v125, 0
    %166 = vmatpush.bf16.msra.mxu0 0
    %167 = vmatpush.bf16.msra.mxu0 0
    %168 = vmatpush.bf16.msra.mxu0 0
    %169 = vmatpush.bf16.msra.mxu0 0
    %170 = vmatpush.bf16.msra.mxu0 %v157
    %171 = vmatpush.bf16.msra.mxu0 %v156
    %172 = vmatpush.bf16.msra.mxu0 %v155
    %173 = vmatpush.bf16.msra.mxu0 %v154
    %174 = vmatmul.bf16.gmra.mxu0 %v164
    %v175 = vpop.f32.mrf.mxu0
    %v176 = vadd.f32 %v136, %v175
    %v177 = vpop.f32.mrf.mxu0
    %178 = vdwg.mxu0
    %v179 = vmax.f32 %v176, 0.0
    %v180 = vpack.c.bf16 %v179, %v179
    %v181 = vld [vmem:[%s5] sm:$0xf]
    %v182 = vld [vmem:[%s5 + $0x4] sm:$0xf]
    %v183 = vld [vmem:[%s5 + $0x8] sm:$0xf]
    %v184 = vld [vmem:[%s5 + $0xc] sm:$0xf]
    %v185 = vld [vmem:[%s5 + $0x10] sm:$0xf]
    %v186 = vld [vmem:[%s5 + $0x14] sm:$0xf]
    %v187 = vld [vmem:[%s5 + $0x18] sm:$0xf]
    %v188 = vld [vmem:[%s5 + $0x1c] sm:$0xf]
    %v189 = vld [vmem:[#allocation9] sm:$0x1]
    %v191 = vperm.slane %v189, 0
    %v201 = vunpack.c.l.b16 %v181
    %v202 = vunpack.c.l.b16 %v182
    %v203 = vunpack.c.l.b16 %v183
    %v204 = vunpack.c.l.b16 %v184
    %v205 = vunpack.c.l.b16 %v185
    %v206 = vunpack.c.l.b16 %v186
    %v207 = vunpack.c.l.b16 %v187
    %v208 = vunpack.c.l.b16 %v188
    %v209 = vpack.c.b16 %v202, %v201
    %v210 = vpack.c.b16 %v204, %v203
    %v211 = vpack.c.b16 %v206, %v205
    %v212 = vpack.c.b16 %v208, %v207
    %v218 = vsel %vm162, %v180, 0
    %220 = vmatpush.bf16.msra.mxu0 0
    %221 = vmatpush.bf16.msra.mxu0 0
    %222 = vmatpush.bf16.msra.mxu0 0
    %223 = vmatpush.bf16.msra.mxu0 0
    %224 = vmatpush.bf16.msra.mxu0 %v212
    %225 = vmatpush.bf16.msra.mxu0 %v211
    %226 = vmatpush.bf16.msra.mxu0 %v210
    %227 = vmatpush.bf16.msra.mxu0 %v209
    %228 = vmatmul.bf16.gmra.mxu0 %v218
    %v229 = vpop.f32.mrf.mxu0
    %v230 = vadd.f32 %v191, %v229
    %v231 = vpop.f32.mrf.mxu0
    %232 = vdwg.mxu0
    %233 = vst [vmem:[%s7] sm:$0xff] %v230
    // Predicated region
    $region50: #{_qnetwork_forward_impl.1} parent=1 // pred_check
      _
    $region51: #{_qnetwork_forward_impl.1} parent=1 // pred_check_branch
      %235 = sbr.rel (0) target = $region53
    $region52: #{_qnetwork_forward_impl.1} parent=1 // pred_region
      _
    $region53: #{_qnetwork_forward_impl.1} parent=1 // pred_fallthru
      _
    // Predicated region
    $region54: #{_qnetwork_forward_impl.1} parent=1 // pred_check
      _
    $region55: #{_qnetwork_forward_impl.1} parent=1 // pred_check_branch
      %237 = sbr.rel (0) target = $region57
    $region56: #{_qnetwork_forward_impl.1} parent=1 // pred_region
      _
    $region57: #{_qnetwork_forward_impl.1} parent=1 // pred_fallthru
      _
    %238 = vsyncpa [#allocation3], 1
    %239 = vsyncpa [#allocation5], 1
    %240 = vsyncpa [#allocation8], 1

</llo_original>
